<compile_context>
chip_gen: v5e
topology: v5e:2x2
jax: 0.10.0
libtpu: 0.0.40
codegen_flags: <defaults>
</compile_context>

<pallas_src>
import functools

import jax
import jax.numpy as jnp
from jax.experimental import pallas as pl
from jax.experimental.pallas import tpu as pltpu

_LANE = 128
_SUM_CHUNK = 512                       # spatial chunk for the f32 pooling accumulation
_SOFT_STEP_BYTES = 8 * 1024 * 1024     # per-step VMEM footprint target (~2 MiB blocks)
_MIN_STEPS = 4                         # keep the grid long enough to pipeline / split cores


def _round_up(n, m):
    return ((n + m - 1) // m) * m


def _physical_vmem_bytes():
    """Best-effort query of per-core VMEM; conservative fallback (v7x = 64 MiB)."""
    try:
        return int(pltpu.get_tpu_info().vmem_capacity_bytes)
    except Exception:
        return 64 * 1024 * 1024


# ---------------------------------------------------------------------------
# Path 1: fused single-pass kernel (whole (tb, ·, ·) slab resident in VMEM).
# ---------------------------------------------------------------------------
def _se_fused_kernel(x_ref, w1t_ref, w2t_ref, o_ref, *, spatial_axis, hw):
    # x_ref/o_ref: (tb, C, HW) if spatial_axis == 2, else (tb, HW, C).
    # Squeeze: chunked f32 sum straight from the ref (no full-tile f32 temp).
    acc = None
    for s in range(0, hw, _SUM_CHUNK):
        n = min(_SUM_CHUNK, hw - s)
        if spatial_axis == 2:
            part = x_ref[:, :, s:s + n]
        else:
            part = x_ref[:, s:s + n, :]
        psum = jnp.sum(part, axis=spatial_axis, dtype=jnp.float32)        # (tb, C)
        acc = psum if acc is None else acc + psum
    y = acc * jnp.float32(1.0 / hw)                                        # (tb, C)

    # Excitation: lane-dense row matmuls; operands stay in the weight dtype
    # (bf16 weights take the bf16 MXU path), accumulation in f32.
    w_dt = w1t_ref.dtype
    h = jnp.maximum(
        jnp.dot(y.astype(w_dt), w1t_ref[...], preferred_element_type=jnp.float32),
        0.0)                                                               # (tb, Cr)
    s_gate = jax.nn.sigmoid(
        jnp.dot(h.astype(w_dt), w2t_ref[...], preferred_element_type=jnp.float32))

    gate = s_gate.astype(o_ref.dtype)
    if spatial_axis == 2:
        o_ref[...] = x_ref[...] * gate[:, :, None]
    else:
        o_ref[...] = x_ref[...] * gate[:, None, :]


# ---------------------------------------------------------------------------
# Path 2: spatially tiled fallback — ONE pallas_call with a phase grid axis.
#   phase 0: accumulate channel sums over spatial tiles, finalize gate (f32).
#   phase 1: re-stream x and apply the gate tile-by-tile.
# ---------------------------------------------------------------------------
def _se_phased_kernel(x_ref, w1t_ref, w2t_ref, o_ref, acc_ref, *,
                      spatial_axis, hw, thw, mask_tail):
    phase = pl.program_id(1)
    k = pl.program_id(2)
    last_k = pl.num_programs(2) - 1

    @pl.when(phase == 0)
    def _pool():
        @pl.when(k == 0)
        def _init():
            acc_ref[...] = jnp.zeros_like(acc_ref)

        x = x_ref[0]                                   # (C, thw) or (thw, C)
        red_ax = spatial_axis - 1                      # axis after dropping batch
        if mask_tail:                                  # static flag
            pos = jax.lax.broadcasted_iota(jnp.int32, x.shape, red_ax) + k * thw
            x = jnp.where(pos < hw, x, jnp.zeros_like(x))
        acc_ref[...] += jnp.sum(x, axis=red_ax, keepdims=True, dtype=jnp.float32)

        @pl.when(k == last_k)
        def _excite():
            if spatial_axis == 2:
                y = jnp.transpose(acc_ref[...]) * jnp.float32(1.0 / hw)   # (1, C)
            else:
                y = acc_ref[...] * jnp.float32(1.0 / hw)                   # (1, C)
            w_dt = w1t_ref.dtype
            h = jnp.maximum(
                jnp.dot(y.astype(w_dt), w1t_ref[...],
                        preferred_element_type=jnp.float32), 0.0)
            s_gate = jax.nn.sigmoid(
                jnp.dot(h.astype(w_dt), w2t_ref[...],
                        preferred_element_type=jnp.float32))               # (1, C) f32
            # Gate stays in f32 in the scratch; cast only at multiply time.
            if spatial_axis == 2:
                acc_ref[...] = jnp.transpose(s_gate)                       # (C, 1)
            else:
                acc_ref[...] = s_gate                                       # (1, C)

    @pl.when(phase == 1)
    def _scale():
        o_ref[0] = x_ref[0] * acc_ref[...].astype(o_ref.dtype)


def se_attention(x, w1, w2, *, data_format="NCHW", block_budget_bytes=None):
    """SEAttention forward.

    x  : (B, C, H, W) if data_format == "NCHW" (PyTorch layout) or
         (B, H, W, C) if data_format == "NHWC".
    w1 : (C//r, C)  fc1 weight (nn.Linear layout, no bias)
    w2 : (C, C//r)  fc2 weight
    """
    if data_format == "NCHW":
        B, C, H, W = x.shape
        c_on_lanes = False
    elif data_format == "NHWC":
        B, H, W, C = x.shape
        c_on_lanes = True
    else:
        raise ValueError(f"unsupported data_format: {data_format}")
    Cr = w1.shape[0]
    HW = H * W

    itemsize = jnp.dtype(x.dtype).itemsize
    sub = max(8, 32 // itemsize)                 # sublane pack: 8 f32 / 16 bf16 / 32 int8
    w_itemsize = jnp.dtype(w1.dtype).itemsize
    sub_w = max(8, 32 // w_itemsize)

    # Never transpose x in the wrapper: the in-kernel layout follows the input
    # format so HBM traffic stays at the 2x minimum.
    if c_on_lanes:
        x_flat = x.reshape(B, HW, C)
        spatial_axis = 1
        pad_sub, pad_lane = _round_up(HW, sub), _round_up(C, _LANE)
    else:
        x_flat = x.reshape(B, C, HW)
        spatial_axis = 2
        pad_sub, pad_lane = _round_up(C, sub), _round_up(HW, _LANE)
    slab = pad_sub * pad_lane * itemsize         # padded VMEM bytes of one batch row

    # Pre-transpose the Linear weights so the in-kernel matmuls are lane-dense.
    w1t = jnp.transpose(w1)                      # (C, Cr)
    w2t = jnp.transpose(w2)                      # (Cr, C)
    w_pad_elems = (_round_up(C, sub_w) * _round_up(Cr, _LANE)
                   + _round_up(Cr, sub_w) * _round_up(C, _LANE))
    w_bytes = 2 * w_pad_elems * w_itemsize       # weight blocks are double-buffered too
    w_raw_bytes = (w1.size + w2.size) * w_itemsize

    phys_vmem = _physical_vmem_bytes()
    vmem_limit = (phys_vmem * 9) // 10
    hard_budget = (vmem_limit * 3) // 4          # headroom for Mosaic internal scratch
    if block_budget_bytes is not None:
        hard_budget = min(hard_budget, int(block_budget_bytes))

    def fused_step_bytes(tb):
        io = 4 * tb * slab                       # in + out, each double-buffered
        if itemsize < 4:                         # f32 temp of one pooling chunk only
            if c_on_lanes:
                tmp = tb * min(_SUM_CHUNK, pad_sub) * pad_lane * 4
            else:
                tmp = tb * pad_sub * min(_SUM_CHUNK, pad_lane) * 4
        else:
            tmp = 0
        return io + tmp + w_bytes + 64 * 1024    # small slack for gate/acc vregs

    single_pass = fused_step_bytes(1) <= hard_budget

    if single_pass:
        # Moderate blocks + enough grid steps to pipeline (and to give both
        # v7x TensorCores work): cap the step footprint at ~8 MiB and cap TB
        # so the grid keeps >= _MIN_STEPS steps when B allows.  TB does not
        # have to divide B (rows are independent; tail padding is discarded).
        step_cap = min(hard_budget, max(_SOFT_STEP_BYTES, fused_step_bytes(1)))
        tb = 1
        while tb < B and fused_step_bytes(tb + 1) <= step_cap:
            tb += 1
        tb = max(1, min(tb, max(1, B // _MIN_STEPS)))
        grid = (pl.cdiv(B, tb),)

        x_block = (tb, HW, C) if c_on_lanes else (tb, C, HW)
        cost = pl.CostEstimate(
            flops=int(2 * B * C * HW + 4 * B * C * Cr),
            transcendentals=int(B * C),
            bytes_accessed=int(2 * B * C * HW * itemsize + w_raw_bytes),
        )
        out_flat = pl.pallas_call(
            functools.partial(_se_fused_kernel, spatial_axis=spatial_axis, hw=HW),
            out_shape=jax.ShapeDtypeStruct(x_flat.shape, x.dtype),
            grid_spec=pltpu.PrefetchScalarGridSpec(
                num_scalar_prefetch=0,
                grid=grid,
                in_specs=[
                    pl.BlockSpec(x_block, lambda b: (b, 0, 0)),
                    pl.BlockSpec((C, Cr), lambda b: (0, 0)),
                    pl.BlockSpec((Cr, C), lambda b: (0, 0)),
                ],
                out_specs=pl.BlockSpec(x_block, lambda b: (b, 0, 0)),
            ),
            compiler_params=pltpu.CompilerParams(
                # "parallel" lets the runtime shard the batch axis across the
                # two v7x TensorCores; portable no-op on v5e/v6e (1 TC).
                dimension_semantics=("parallel",),
                vmem_limit_bytes=int(vmem_limit),
            ),
            cost_estimate=cost,
        )(x_flat, w1t, w2t)
        return out_flat.reshape(x.shape)

    # ---------------- spatially tiled fallback (single phased call) ---------
    per_sp = (pad_lane if c_on_lanes else pad_sub) * (4 * itemsize + 4)
    avail = max(0, hard_budget - w_bytes - 64 * 1024)
    thw = max(_LANE, ((avail // per_sp) // _LANE) * _LANE)
    thw = min(thw, _round_up(HW, _LANE))
    n_sp = pl.cdiv(HW, thw)
    mask_tail = (HW % thw) != 0

    if c_on_lanes:
        x_block = (1, thw, C)
        x_map = lambda b, p, k: (b, k, 0)
        # Output block index is frozen at tile 0 during phase 0 (no writes /
        # no garbage writebacks); it tracks k during phase 1.
        o_map = lambda b, p, k: (b, k * p, 0)
        acc_shape = (1, C)
    else:
        x_block = (1, C, thw)
        x_map = lambda b, p, k: (b, 0, k)
        o_map = lambda b, p, k: (b, 0, k * p)
        acc_shape = (C, 1)

    cost = pl.CostEstimate(
        flops=int(3 * B * C * HW + 4 * B * C * Cr),
        transcendentals=int(B * C),
        bytes_accessed=int(3 * B * C * HW * itemsize + w_raw_bytes),
    )
    out_flat = pl.pallas_call(
        functools.partial(_se_phased_kernel, spatial_axis=spatial_axis,
                          hw=HW, thw=thw, mask_tail=mask_tail),
        out_shape=jax.ShapeDtypeStruct(x_flat.shape, x.dtype),
        grid_spec=pltpu.PrefetchScalarGridSpec(
            num_scalar_prefetch=0,
            grid=(B, 2, n_sp),                   # (batch, phase, spatial tile)
            in_specs=[
                pl.BlockSpec(x_block, x_map),
                pl.BlockSpec((C, Cr), lambda b, p, k: (0, 0)),
                pl.BlockSpec((Cr, C), lambda b, p, k: (0, 0)),
            ],
            out_specs=pl.BlockSpec(x_block, o_map),
            scratch_shapes=[pltpu.VMEM(acc_shape, jnp.float32)],
        ),
        compiler_params=pltpu.CompilerParams(
            dimension_semantics=("parallel", "arbitrary", "arbitrary"),
            vmem_limit_bytes=int(vmem_limit),
        ),
        cost_estimate=cost,
    )(x_flat, w1t, w2t)
    return out_flat.reshape(x.shape)


def se_attention_ref(x_nchw, w1, w2):
    """Plain-JAX reference matching the PyTorch forward (NCHW)."""
    y = jnp.mean(x_nchw, axis=(2, 3))            # (B, C)  adaptive avg pool to 1x1
    h = jnp.maximum(y @ w1.T, 0.0)               # (B, C//r)
    s = jax.nn.sigmoid(h @ w2.T)                 # (B, C)
    return x_nchw * s[:, :, None, None]


if __name__ == "__main__":
    key = jax.random.PRNGKey(0)

    # --- Case 1: NCHW, f32, fused single-pass path (spatial on lanes). ------
    B, C, H, W = 2, 4, 16, 16
    reduction = 2
    Cr = C // reduction
    kx, k1, k2 = jax.random.split(key, 3)
    x = jax.random.normal(kx, (B, C, H, W), dtype=jnp.float32)
    # init_weights(): normal(std=0.001), no bias.
    w1 = 0.001 * jax.random.normal(k1, (Cr, C), dtype=jnp.float32)   # Linear(C -> C//r)
    w2 = 0.001 * jax.random.normal(k2, (C, Cr), dtype=jnp.float32)   # Linear(C//r -> C)
    ref = se_attention_ref(x, w1, w2)

    out = se_attention(x, w1, w2)
    jax.block_until_ready(out)
    assert jnp.allclose(out, ref, atol=1e-5, rtol=1e-5), "fused NCHW path mismatch"

    # --- Case 2: forced spatially tiled fallback (phase-fused gate+scale). --
    out_tiled = se_attention(x, w1, w2, block_budget_bytes=8 * 1024)
    jax.block_until_ready(out_tiled)
    assert jnp.allclose(out_tiled, ref, atol=1e-5, rtol=1e-5), "tiled path mismatch"

    # --- Case 3: forced fallback with a ragged spatial tail (HW = 200). -----
    H2, W2 = 10, 20
    x2 = jax.random.normal(jax.random.fold_in(key, 1), (B, C, H2, W2), dtype=jnp.float32)
    ref2 = se_attention_ref(x2, w1, w2)
    out2 = se_attention(x2, w1, w2, block_budget_bytes=8 * 1024)
    jax.block_until_ready(out2)
    assert jnp.allclose(out2, ref2, atol=1e-5, rtol=1e-5), "ragged-tail path mismatch"

    # --- Case 4: NHWC input (channels on lanes, C = 256). --------------------
    C4, r4, H4, W4 = 256, 16, 4, 4
    Cr4 = C4 // r4
    kx4, k14, k24 = jax.random.split(jax.random.fold_in(key, 2), 3)
    x4 = jax.random.normal(kx4, (B, C4, H4, W4), dtype=jnp.float32)
    w14 = 0.001 * jax.random.normal(k14, (Cr4, C4), dtype=jnp.float32)
    w24 = 0.001 * jax.random.normal(k24, (C4, Cr4), dtype=jnp.float32)
    ref4 = se_attention_ref(x4, w14, w24)
    out4 = se_attention(jnp.transpose(x4, (0, 2, 3, 1)), w14, w24, data_format="NHWC")
    jax.block_until_ready(out4)
    assert jnp.allclose(jnp.transpose(out4, (0, 3, 1, 2)), ref4,
                        atol=1e-5, rtol=1e-5), "NHWC path mismatch"

    # --- Case 5: bf16 activations (gate math stays in f32). ------------------
    out_bf16 = se_attention(x.astype(jnp.bfloat16), w1, w2)
    jax.block_until_ready(out_bf16)
    assert jnp.allclose(out_bf16.astype(jnp.float32), ref, atol=2e-2, rtol=2e-2), \
        "bf16 path mismatch"

    print("KERNEL_OK")
</pallas_src>

<mosaic_0001>
module attributes {stable_mosaic.version = 11 : i64} {
  func.func @_se_fused_kernel(%arg0: i32, %arg1: memref<1x4x256xf32, #tpu.memory_space<vmem>>, %arg2: memref<4x2xf32, #tpu.memory_space<vmem>>, %arg3: memref<2x4xf32, #tpu.memory_space<vmem>>, %arg4: memref<1x4x256xf32, #tpu.memory_space<vmem>>) attributes {dimension_semantics = [#tpu.dimension_semantics<parallel>], iteration_bounds = array<i64: 2>, scalar_prefetch = 0 : i64, scratch_operands = 0 : i64, tpu.core_type = #tpu.core_type<tc>, window_params = [{transform_indices = @transform_0, window_bounds = array<i64: 1, 4, 256>}, {pipeline_mode = #tpu.pipeline_mode<synchronous>, transform_indices = @transform_1, window_bounds = array<i64: 4, 2>}, {pipeline_mode = #tpu.pipeline_mode<synchronous>, transform_indices = @transform_2, window_bounds = array<i64: 2, 4>}, {transform_indices = @transform_3, window_bounds = array<i64: 1, 4, 256>}]} {
    %c0 = arith.constant 0 : index
    %c0_0 = arith.constant 0 : index
    %c0_1 = arith.constant 0 : index
    %0 = vector.load %arg1[%c0, %c0_0, %c0_1] : memref<1x4x256xf32, #tpu.memory_space<vmem>>, vector<1x4x256xf32>
    %cst = arith.constant dense<0.000000e+00> : vector<1x4xf32>
    %1 = vector.multi_reduction <add>, %0, %cst [2] : vector<1x4x256xf32> to vector<1x4xf32>
    %cst_2 = arith.constant 3.906250e-03 : f32
    %2 = vector.broadcast %cst_2 : f32 to vector<1x4xf32>
    %3 = arith.mulf %1, %2 : vector<1x4xf32>
    %c0_3 = arith.constant 0 : index
    %c0_4 = arith.constant 0 : index
    %4 = vector.load %arg2[%c0_3, %c0_4] : memref<4x2xf32, #tpu.memory_space<vmem>>, vector<4x2xf32>
    %cst_5 = arith.constant dense<0.000000e+00> : vector<1x2xf32>
    %5 = tpu.matmul %3, %4, %cst_5 {dimension_numbers = #tpu.dot_dimension_numbers<[1], [0], [0], [1], [0, 0, 1, 1], [], []>} : vector<1x4xf32>, vector<4x2xf32>, vector<1x2xf32> -> vector<1x2xf32>
    %cst_6 = arith.constant 0.000000e+00 : f32
    %6 = vector.broadcast %cst_6 : f32 to vector<1x2xf32>
    %7 = arith.maximumf %5, %6 : vector<1x2xf32>
    %c0_7 = arith.constant 0 : index
    %c0_8 = arith.constant 0 : index
    %8 = vector.load %arg3[%c0_7, %c0_8] : memref<2x4xf32, #tpu.memory_space<vmem>>, vector<2x4xf32>
    %cst_9 = arith.constant dense<0.000000e+00> : vector<1x4xf32>
    %9 = tpu.matmul %7, %8, %cst_9 {dimension_numbers = #tpu.dot_dimension_numbers<[1], [0], [0], [1], [0, 0, 1, 1], [], []>} : vector<1x2xf32>, vector<2x4xf32>, vector<1x4xf32> -> vector<1x4xf32>
    %10 = arith.negf %9 : vector<1x4xf32>
    %11 = math.exp %10 : vector<1x4xf32>
    %cst_10 = arith.constant 1.000000e+00 : f32
    %12 = vector.broadcast %cst_10 : f32 to vector<1x4xf32>
    %13 = arith.addf %12, %11 : vector<1x4xf32>
    %14 = arith.divf %12, %13 : vector<1x4xf32>
    %c0_11 = arith.constant 0 : index
    %c0_12 = arith.constant 0 : index
    %c0_13 = arith.constant 0 : index
    %15 = vector.load %arg1[%c0_11, %c0_12, %c0_13] : memref<1x4x256xf32, #tpu.memory_space<vmem>>, vector<1x4x256xf32>
    %16 = vector.shape_cast %14 : vector<1x4xf32> to vector<1x4x1xf32>
    %17 = vector.broadcast %16 : vector<1x4x1xf32> to vector<1x4x256xf32>
    %18 = arith.mulf %15, %17 : vector<1x4x256xf32>
    %c0_14 = arith.constant 0 : index
    %c0_15 = arith.constant 0 : index
    %c0_16 = arith.constant 0 : index
    %19 = vector.load %arg4[%c0_14, %c0_15, %c0_16] : memref<1x4x256xf32, #tpu.memory_space<vmem>>, vector<1x4x256xf32>
    tpu.vector_store %arg4[%c0_14, %c0_15, %c0_16], %18 {strides = array<i32>} : memref<1x4x256xf32, #tpu.memory_space<vmem>>, vector<1x4x256xf32>,
    return
  }
  func.func @transform_0(%arg0: i32) -> (i32, i32, i32) {
    %c0_i32 = arith.constant 0 : i32
    %c0_i32_0 = arith.constant 0 : i32
    %c0_i32_1 = arith.constant 0 : i32
    return %arg0, %c0_i32, %c0_i32_0 : i32, i32, i32
  }
  func.func @transform_1(%arg0: i32) -> (i32, i32) {
    %c0_i32 = arith.constant 0 : i32
    %c0_i32_0 = arith.constant 0 : i32
    %c0_i32_1 = arith.constant 0 : i32
    return %c0_i32, %c0_i32_0 : i32, i32
  }
  func.func @transform_2(%arg0: i32) -> (i32, i32) {
    %c0_i32 = arith.constant 0 : i32
    %c0_i32_0 = arith.constant 0 : i32
    %c0_i32_1 = arith.constant 0 : i32
    return %c0_i32, %c0_i32_0 : i32, i32
  }
  func.func @transform_3(%arg0: i32) -> (i32, i32, i32) {
    %c0_i32 = arith.constant 0 : i32
    %c0_i32_0 = arith.constant 0 : i32
    %c0_i32_1 = arith.constant 0 : i32
    return %arg0, %c0_i32, %c0_i32_0 : i32, i32, i32
  }
}

</mosaic_0001>

<llo_original>
// kernel: tpu_custom_call.1
$region0: #{tpu_custom_call.1}
  #allocation0 [shape = 'u32[]', space=smem, size = 0x4, offset = 0x4, fixed_abs, tag = 'smem constant byte address 0x4 - core index']
  #allocation1 [shape = 'u32[72,128]{1,0:T(1,128)}', space=vmem, size = 0x9000, scoped, tag = 'internal scratch']
  %s0 = inlined_call_operand.hbm [shape: f32[2,4,256], index: 0, kind: input, shape index: {}]
  %s1 = inlined_call_operand.vmem [shape: f32[4,2], index: 1, kind: input, shape index: {}]
  %s2 = inlined_call_operand.vmem [shape: f32[2,4], index: 2, kind: input, shape index: {}]
  %s3 = inlined_call_operand.hbm [shape: f32[2,4,256], index: 3, kind: output, shape index: {}]
  %s4 = sld [smem:[#allocation0]]
  $region49: #{tpu_custom_call.1} parent=0
    _
  %s6 = ssub.s32 1, %s4
  %s7 = scalar_select 0, %s6, %s4
  $region1: #{tpu_custom_call.1} parent=0
    #allocation2 [shape = 'u8[8192]{0}', space=vmem, size = 0x2000, scoped, tag = 'input window, operand 0']
    #allocation3 [shape = 's32[2]{0}', space=sflag, size = 0x8, scoped, tag = 'scoped memory for tpu_custom_call.1']
    #allocation4 [shape = 's32[2]{0}', space=sflag, size = 0x8, scoped, tag = 'scoped memory for tpu_custom_call.1']
    #allocation5 [shape = 'u8[8192]{0}', space=vmem, size = 0x2000, scoped, tag = 'output window, operand 0']
    %8 = vsyncpa [#allocation3], 0
    %s9 = scalar_lea.sflag [#allocation3], 1
    %10 = vsyncpa %s9, 0
    %11 = vsyncpa [#allocation4], 0
    %s12 = scalar_lea.sflag [#allocation4], 1
    %13 = vsyncpa %s12, 0
    loop: start=0, step=1, limit=4
    $region2: #{tpu_custom_call.1} parent=1 // loop_pre_header
      _
    $region3: #{tpu_custom_call.1} parent=1 // loop_header
      %s15 = sphi 0, %s19
      %p16 = scmp.ge.s32.totalorder %s15, 4
      %s25 = sphi 0, %s27
      %s28 = sphi 0, %s25
      %s29 = sphi 0, %s28
      %s45 = sphi 0, %s29
      %s49 = sphi 0, %s49
      %s51 = sphi 0, %s49
      %s52 = sphi 0, %s51
      %s66 = sphi 0, %s52
      %s70 = sphi 0, %s70
      %s72 = sphi 0, %s70
      %s73 = sphi 0, %s72
      %s87 = sphi 0, %s73
      %s93 = sphi 0, %s95
      %s96 = sphi 0, %s93
      %s97 = sphi 0, %s96
      %s113 = sphi 0, %s97
    $region4: #{tpu_custom_call.1} parent=1 // loop_header_branch
      %18 = sbr.rel (%p16) target = $region8
    $region5: #{tpu_custom_call.1} parent=1 // loop_body
      %s20 = ssub.s32 %s15, 1
      %s21 = ssub.s32 %s15, 2
      %s22 = sadd.s32 %s15, 1
      %s23 = ssub.s32 %s15, %s22
      %p24 = scmp.eq.s32.totalorder %s23, 0
      %s26 = sadd.s32 %s25, 1
      %s27 = scalar_select %p24, %s25, %s26
      %p30 = pneg %p24
      %p31 = scmp.eq.s32.totalorder %s15, 1
      %p32 = por %p30, %p31
      %p33 = scmp.ne.s32.totalorder %s25, %s28
      %p34 = scmp.eq.s32.totalorder %s15, 0
      %p35 = por %p33, %p34
      %p36 = scmp.ne.s32.totalorder %s25, %s28
      %p37 = scmp.eq.s32.totalorder %s20, 1
      %p38 = por %p36, %p37
      %p39 = scmp.ne.s32.totalorder %s28, %s29
      %p40 = scmp.eq.s32.totalorder %s20, 0
      %p41 = por %p39, %p40
      %p42 = scmp.ne.s32.totalorder %s28, %s29
      %p43 = scmp.eq.s32.totalorder %s21, 1
      %p44 = por %p42, %p43
      %p46 = scmp.ne.s32.totalorder %s29, %s45
      %p47 = scmp.eq.s32.totalorder %s21, 0
      %p48 = por %p46, %p47
      %s50 = sadd.s32 %s49, 1
      %p53 = scmp.eq.s32.totalorder %s15, 1
      %p54 = scmp.ne.s32.totalorder %s49, %s51
      %p55 = scmp.eq.s32.totalorder %s15, 0
      %p56 = por %p54, %p55
      %p57 = scmp.ne.s32.totalorder %s49, %s51
      %p58 = scmp.eq.s32.totalorder %s20, 1
      %p59 = por %p57, %p58
      %p60 = scmp.ne.s32.totalorder %s51, %s52
      %p61 = scmp.eq.s32.totalorder %s20, 0
      %p62 = por %p60, %p61
      %p63 = scmp.ne.s32.totalorder %s51, %s52
      %p64 = scmp.eq.s32.totalorder %s21, 1
      %p65 = por %p63, %p64
      %p67 = scmp.ne.s32.totalorder %s52, %s66
      %p68 = scmp.eq.s32.totalorder %s21, 0
      %p69 = por %p67, %p68
      %s71 = sadd.s32 %s70, 1
      %p74 = scmp.eq.s32.totalorder %s15, 1
      %p75 = scmp.ne.s32.totalorder %s70, %s72
      %p76 = scmp.eq.s32.totalorder %s15, 0
      %p77 = por %p75, %p76
      %p78 = scmp.ne.s32.totalorder %s70, %s72
      %p79 = scmp.eq.s32.totalorder %s20, 1
      %p80 = por %p78, %p79
      %p81 = scmp.ne.s32.totalorder %s72, %s73
      %p82 = scmp.eq.s32.totalorder %s20, 0
      %p83 = por %p81, %p82
      %p84 = scmp.ne.s32.totalorder %s72, %s73
      %p85 = scmp.eq.s32.totalorder %s21, 1
      %p86 = por %p84, %p85
      %p88 = scmp.ne.s32.totalorder %s73, %s87
      %p89 = scmp.eq.s32.totalorder %s21, 0
      %p90 = por %p88, %p89
      %s91 = ssub.s32 %s15, %s22
      %p92 = scmp.eq.s32.totalorder %s91, 0
      %s94 = sadd.s32 %s93, 1
      %s95 = scalar_select %p92, %s93, %s94
      %p98 = pneg %p92
      %p99 = scmp.eq.s32.totalorder %s15, 1
      %p100 = por %p98, %p99
      %p101 = scmp.ne.s32.totalorder %s93, %s96
      %p102 = scmp.eq.s32.totalorder %s15, 0
      %p103 = por %p101, %p102
      %p104 = scmp.ne.s32.totalorder %s93, %s96
      %p105 = scmp.eq.s32.totalorder %s20, 1
      %p106 = por %p104, %p105
      %p107 = scmp.ne.s32.totalorder %s96, %s97
      %p108 = scmp.eq.s32.totalorder %s20, 0
      %p109 = por %p107, %p108
      %p110 = scmp.ne.s32.totalorder %s96, %s97
      %p111 = scmp.eq.s32.totalorder %s21, 1
      %p112 = por %p110, %p111
      %p114 = scmp.ne.s32.totalorder %s97, %s113
      %p115 = scmp.eq.s32.totalorder %s21, 0
      %p116 = por %p114, %p115
      %p117 = scmp.le.s32.totalorder 1, %s15
      %p118 = scmp.lt.s32.totalorder %s15, 3
      %p119 = pnand %p117, %p118
      %p120 = pneg %p119
      // Predicated region
      $region9: #{tpu_custom_call.1} parent=5 // pred_check
        _
      $region10: #{tpu_custom_call.1} parent=5 // pred_check_branch
        %122 = sbr.rel (%p119) target = $region12
      $region11: #{tpu_custom_call.1} parent=5 // pred_region
        %s123 = ssub.s32 %s15, 1
        // Predicated region
        $region13: #{tpu_custom_call.1} parent=11 // pred_check
          %p124 = pneg %p62
        $region14: #{tpu_custom_call.1} parent=11 // pred_check_branch
          %126 = sbr.rel (%p124) target = $region16
        $region15: #{tpu_custom_call.1} parent=11 // pred_region
          _
        $region16: #{tpu_custom_call.1} parent=11 // pred_fallthru
          _
        // Predicated region
        $region17: #{tpu_custom_call.1} parent=11 // pred_check
          %p127 = pneg %p83
        $region18: #{tpu_custom_call.1} parent=11 // pred_check_branch
          %129 = sbr.rel (%p127) target = $region20
        $region19: #{tpu_custom_call.1} parent=11 // pred_region
          _
        $region20: #{tpu_custom_call.1} parent=11 // pred_fallthru
          _
      $region12: #{tpu_custom_call.1} parent=5 // pred_fallthru
        _
      %p130 = scmp.lt.s32.totalorder %s15, 2
      // Predicated region
      $region21: #{tpu_custom_call.1} parent=5 // pred_check
        %p131 = pneg %p130
      $region22: #{tpu_custom_call.1} parent=5 // pred_check_branch
        %133 = sbr.rel (%p131) target = $region24
      $region23: #{tpu_custom_call.1} parent=5 // pred_region
        // Predicated region
        $region25: #{tpu_custom_call.1} parent=23 // pred_check
          %p134 = pneg %p35
        $region26: #{tpu_custom_call.1} parent=23 // pred_check_branch
          %136 = sbr.rel (%p134) target = $region28
        $region27: #{tpu_custom_call.1} parent=23 // pred_region
          %s137 = sand.u32 %s25, 1
          %s138 = scalar_lea.sflag [#allocation3], %s137
          %s139 = sand.u32 %s25, 1
          %s140 = smul.addr %s139, 8
          %s141 = scalar_lea.vmem [#allocation2], %s140
          %143 = vsyncadd %s138, 0
          %s144 = smul.addr %s15, 2
          %s145 = smul.addr %s144, 4
          %s146 = scalar_lea.hbm %s0, %s145
          %s148 = sshll.u32 %s146, 4
          %s149 = int_to_ptr.hbm [resolvable:$true] %s148
          %s150 = sshll.u32 %s141, 4
          %s151 = int_to_ptr.vmem [resolvable:$true] %s150
          %153 = dma.hbm_to_vmem [thread:$0]  %s149, 128, %s151, %s138
        $region28: #{tpu_custom_call.1} parent=23 // pred_fallthru
          _
      $region24: #{tpu_custom_call.1} parent=5 // pred_fallthru
        _
      %p154 = scmp.le.s32.totalorder 1, %s15
      %p155 = scmp.lt.s32.totalorder %s15, 3
      %p156 = pnand %p154, %p155
      %p157 = pneg %p156
      // Predicated region
      $region29: #{tpu_custom_call.1} parent=5 // pred_check
        _
      $region30: #{tpu_custom_call.1} parent=5 // pred_check_branch
        %159 = sbr.rel (%p156) target = $region32
      $region31: #{tpu_custom_call.1} parent=5 // pred_region
        %s160 = ssub.s32 %s15, 1
        %s161 = sand.u32 %s28, 1
        %s162 = scalar_lea.sflag [#allocation3], %s161
        %s163 = sand.u32 %s28, 1
        %s164 = smul.addr %s163, 8
        %s165 = scalar_lea.vmem [#allocation2], %s164
        // Predicated region
        $region33: #{tpu_custom_call.1} parent=31 // pred_check
          %p166 = pneg %p41
        $region34: #{tpu_custom_call.1} parent=31 // pred_check_branch
          %168 = sbr.rel (%p166) target = $region36
        $region35: #{tpu_custom_call.1} parent=31 // pred_region
          %170 = dma.done %s162, 128
        $region36: #{tpu_custom_call.1} parent=31 // pred_fallthru
          _
        %s171 = sand.u32 %s28, 1
        %s172 = scalar_lea.sflag [#allocation3], %s171
        %s173 = sand.u32 %s28, 1
        %s174 = smul.addr %s173, 8
        %s175 = scalar_lea.vmem [#allocation2], %s174
        %p176 = pneg %p41
        %p177 = pneg %p38
        %p178 = pneg %p62
        %p179 = pneg %p59
        %p180 = pneg %p83
        %p181 = pneg %p80
        %p182 = pneg %p109
        %p183 = pneg %p106
        %s184 = sand.u32 %s96, 1
        %s185 = scalar_lea.sflag [#allocation4], %s184
        %s186 = sand.u32 %s96, 1
        %s187 = smul.addr %s186, 8
        %s188 = scalar_lea.vmem [#allocation5], %s187
        %v189 = vld [vmem:[%s165] sm:$0xff]
        %191 = vst [vmem:[#allocation1] ss:$2 sm:$0xff] %v189
        %v192 = vld.sshfl [vmem:[#allocation1] sm:$0xff pattern:$0x75316420]
        %v193 = vld.sshfl [vmem:[#allocation1 + $0x8] sm:$0xff pattern:$0x75316420]
        %vm196 = vcmask 1043456
        %v197 = vsel %vm196, %v192, 0.0
        %v198 = vsel %vm196, %v193, 0.0
        %v199 = vadd.f32 %v197, %v198
        %200 = vadd.xlane.f32.xlu0 %v199
        %v201 = vpop.xlane.xlu0 %200
        %v202 = vmul.f32 %v201, 0.00390625
        %v203 = vld [vmem:[%s1] sm:$0xf]
        %v205 = vlaneseq
        %v206 = vand.u32 %v205, 127
        %v207 = vperm.slane %v202, %v206
        %vm208 = vcmask 31744
        %v209 = vsel %vm208, %v207, 0
        %v212 = vsel %vm196, %v203, 0
        %214 = vmatpush.msra.mxu0 0.0
        %215 = vmatpush.msra.mxu0 0.0
        %216 = vmatpush.msra.mxu0 0.0
        %217 = vmatpush.msra.mxu0 0.0
        %218 = vmatpush.msra.mxu0 0.0
        %219 = vmatpush.msra.mxu0 0.0
        %220 = vmatpush.msra.mxu0 0.0
        %221 = vmatpush.msra.mxu0 0.0
        %222 = vmatpush.msra.mxu0 0.0
        %223 = vmatpush.msra.mxu0 0.0
        %224 = vmatpush.msra.mxu0 0.0
        %225 = vmatpush.msra.mxu0 0.0
        %226 = vmatpush.msra.mxu0 0.0
        %227 = vmatpush.msra.mxu0 0.0
        %228 = vmatpush.msra.mxu0 0.0
        %229 = vmatpush.msra.mxu0 %v212
        %230 = vmatmul.f32.gmra.mxu0 %v209
        %v231 = vpop.f32.mrf.mxu0
        %v232 = vadd.f32 0.0, %v231
        %233 = vdwg.mxu0
        %v234 = vmax.f32 %v232, 0.0
        %v235 = vld [vmem:[%s2] sm:$0x3]
        %vm236 = vcmask 15360
        %v238 = vsel %vm236, %v234, 0
        %vm240 = vcmask 1041408
        %v242 = vsel %vm240, %v235, 0
        %244 = vmatpush.msra.mxu0 0.0
        %245 = vmatpush.msra.mxu0 0.0
        %246 = vmatpush.msra.mxu0 0.0
        %247 = vmatpush.msra.mxu0 0.0
        %248 = vmatpush.msra.mxu0 0.0
        %249 = vmatpush.msra.mxu0 0.0
        %250 = vmatpush.msra.mxu0 0.0
        %251 = vmatpush.msra.mxu0 0.0
        %252 = vmatpush.msra.mxu0 0.0
        %253 = vmatpush.msra.mxu0 0.0
        %254 = vmatpush.msra.mxu0 0.0
        %255 = vmatpush.msra.mxu0 0.0
        %256 = vmatpush.msra.mxu0 0.0
        %257 = vmatpush.msra.mxu0 0.0
        %258 = vmatpush.msra.mxu0 0.0
        %259 = vmatpush.msra.mxu0 %v242
        %260 = vmatmul.f32.gmra.mxu0 %v238
        %v261 = vpop.f32.mrf.mxu0
        %v262 = vadd.f32 0.0, %v261
        %263 = vdwg.mxu0
        %v264 = vxor.u32 %v262, 2147483648
        %v265 = vmul.f32 %v264, 1.442695
        %v266 = vpow.pop %v265
        %v267 = vadd.f32 %v266, 1.0
        %v268 = vrcp.pop %v267
        %v269 = vmul.f32 %v267, %v268
        %v270 = vsub.f32 1.0, %v269
        %v271 = vmul.f32 %v268, %v270
        %v272 = vadd.f32 %v268, %v271
        %vm273 = vweird.f32 %v267
        %vm274 = vweird.f32 %v268
        %vm275 = vmor %vm273, %vm274
        %v276 = vsel %vm275, %v268, %v272
        %v277 = vand.u32 2147483647, %v267
        %vm278 = vcmp.eq.f32.partialorder %v277, 8.507059e+37
        %v279 = vand.u32 %v267, 2147483648
        %v280 = vor.u32 1.1754944e-38, %v279
        %v281 = vsel %vm278, %v280, %v276
        %v282 = vmul.f32 1.0, %v281
        %v283 = vperm.slane %v282, 0
        %v284 = vlaneseq
        %v285 = vshrl.u32 %v284, 7
        %287 = vset.pattern.permute.xlu0 %v285
        %288 = vperm.xlu0 %287, %v283
        %v289 = vpop.permute.xlu0 %288
        %v292 = vunpack.c.l.s4 839922192
        %v293 = vunpack.c.0.s8 %v292
        %v294 = vperm.slane %v289, %v293
        %v296 = vmul.f32 %v189, %v294
        %297 = vst [vmem:[%s188] sm:$0xff] %v296
        %s298 = sand.u32 %s96, 1
        %s299 = scalar_lea.sflag [#allocation4], %s298
        %s300 = sand.u32 %s96, 1
        %s301 = smul.addr %s300, 8
        %s302 = scalar_lea.vmem [#allocation5], %s301
        // Predicated region
        $region37: #{tpu_custom_call.1} parent=31 // pred_check
          %p303 = pneg %p106
        $region38: #{tpu_custom_call.1} parent=31 // pred_check_branch
          %305 = sbr.rel (%p303) target = $region40
        $region39: #{tpu_custom_call.1} parent=31 // pred_region
          %307 = vsyncadd %s299, 0
          %s308 = smul.addr %s20, 2
          %s309 = smul.addr %s308, 4
          %s310 = scalar_lea.hbm %s3, %s309
          %s312 = sshll.u32 %s302, 4
          %s313 = int_to_ptr.vmem [resolvable:$true] %s312
          %s314 = sshll.u32 %s310, 4
          %s315 = int_to_ptr.hbm [resolvable:$true] %s314
          %317 = dma.vmem_to_hbm [thread:$0]  %s313, 128, %s315, %s299
        $region40: #{tpu_custom_call.1} parent=31 // pred_fallthru
          _
      $region32: #{tpu_custom_call.1} parent=5 // pred_fallthru
        _
      %p318 = scmp.le.s32.totalorder 2, %s15
      // Predicated region
      $region41: #{tpu_custom_call.1} parent=5 // pred_check
        %p319 = pneg %p318
      $region42: #{tpu_custom_call.1} parent=5 // pred_check_branch
        %321 = sbr.rel (%p319) target = $region44
      $region43: #{tpu_custom_call.1} parent=5 // pred_region
        %s322 = ssub.s32 %s15, 2
        // Predicated region
        $region45: #{tpu_custom_call.1} parent=43 // pred_check
          %p323 = pneg %p112
        $region46: #{tpu_custom_call.1} parent=43 // pred_check_branch
          %325 = sbr.rel (%p323) target = $region48
        $region47: #{tpu_custom_call.1} parent=43 // pred_region
          %s326 = sand.u32 %s97, 1
          %s327 = scalar_lea.sflag [#allocation4], %s326
          %s328 = sand.u32 %s97, 1
          %s329 = smul.addr %s328, 8
          %s330 = scalar_lea.vmem [#allocation5], %s329
          %332 = dma.done %s327, 128
        $region48: #{tpu_custom_call.1} parent=43 // pred_fallthru
          _
      $region44: #{tpu_custom_call.1} parent=5 // pred_fallthru
        _
    $region6: #{tpu_custom_call.1} parent=1 // loop_footer
      %s19 = sadd.s32 1, %s15
    $region7: #{tpu_custom_call.1} parent=1 // loop_footer_branch
      %14 = sbr.rel target = $region3
    $region8: #{tpu_custom_call.1} parent=1 // loop_exit
      _
    %333 = vsyncpa [#allocation3], 1
    %s334 = scalar_lea.sflag [#allocation3], 1
    %335 = vsyncpa %s334, 1
    %336 = vsyncpa [#allocation4], 1
    %s337 = scalar_lea.sflag [#allocation4], 1
    %338 = vsyncpa %s337, 1

</llo_original>
